<compile_context>
chip_gen: v7x
topology: tpu7x:2x2x1
jax: 0.10.0
libtpu: 0.0.40
codegen_flags: <defaults>
</compile_context>

<pallas_src>
import jax
import jax.numpy as jnp
from jax import lax
from jax.experimental import pallas as pl
from jax.experimental.pallas import tpu as pltpu


def _linear_kernel(x_ref, w_ref, b_ref, o_ref):
    # x: [tm, K], w: [N, K] (PyTorch layout) -> contract K with K (trans-B matmul).
    acc = lax.dot_general(
        x_ref[...], w_ref[...],
        dimension_numbers=(((1,), (1,)), ((), ())),
        preferred_element_type=jnp.float32,
    )
    o_ref[...] = (acc + b_ref[...]).astype(o_ref.dtype)


def _pick_batch_tile(rows, batch_tile):
    """Largest legal tile, but guarantee >= 2 grid steps (v7x: use both TCs)."""
    if rows <= 16:
        return rows                      # single tile == full dim (layout-legal)
    half = (rows // 2) // 8 * 8          # multiple of 8, <= rows/2
    return min(batch_tile, max(8, half))


def linear_qnetwork_forward(x, weight, bias, *, batch_tile=2048,
                            gridless_budget_bytes=8 * 1024 * 1024,
                            repack_min_batch=1024):
    """Equivalent of nn.Linear(state_dim, action_dim)(x).

    x:      [B, state_dim]            float32
    weight: [action_dim, state_dim]   (PyTorch convention, NOT transposed)
    bias:   [action_dim]
    returns [B, action_dim]           float32
    """
    B, K = x.shape
    N = weight.shape[0]
    dtype = x.dtype

    # ---- optional batch-into-lanes repack (lane-dense x and out tiles) ----
    repack = 1
    if 0 < N < 128 and 128 % N == 0:
        r = 128 // N
        if B >= repack_min_batch and B % r == 0:
            repack = r

    if repack > 1:
        x_eff = x.reshape(B // repack, repack * K)                  # free reshape
        w_eff = jnp.kron(jnp.eye(repack, dtype=weight.dtype), weight)  # [rN, rK]
        b_eff = jnp.tile(bias, repack).reshape(1, repack * N)
    else:
        x_eff = x
        w_eff = weight
        b_eff = bias.reshape(1, N)

    Be, Ke = x_eff.shape
    Ne = w_eff.shape[0]

    resident_bytes = (
        x_eff.size * x_eff.dtype.itemsize
        + w_eff.size * w_eff.dtype.itemsize
        + b_eff.size * b_eff.dtype.itemsize
        + Be * Ne * jnp.dtype(dtype).itemsize
    )

    if resident_bytes <= gridless_budget_bytes:
        # Gridless single-shot: whole problem resident in VMEM, zero grid-step
        # overhead.  8 MiB default budget fits every gen's default scoped VMEM.
        out_eff = pl.pallas_call(
            _linear_kernel,
            out_shape=jax.ShapeDtypeStruct((Be, Ne), dtype),
            in_specs=[
                pl.BlockSpec(memory_space=pltpu.MemorySpace.VMEM),
                pl.BlockSpec(memory_space=pltpu.MemorySpace.VMEM),
                pl.BlockSpec(memory_space=pltpu.MemorySpace.VMEM),
            ],
            out_specs=pl.BlockSpec(memory_space=pltpu.MemorySpace.VMEM),
        )(x_eff, w_eff, b_eff)
    else:
        # Batch-tiled path: pipeline x/out over the batch, keep weight+bias
        # resident (constant index_map), shard the batch axis across cores.
        tm = _pick_batch_tile(Be, batch_tile)
        grid = (pl.cdiv(Be, tm),)
        out_eff = pl.pallas_call(
            _linear_kernel,
            out_shape=jax.ShapeDtypeStruct((Be, Ne), dtype),
            grid=grid,
            in_specs=[
                pl.BlockSpec((tm, Ke), lambda i: (i, 0)),
                pl.BlockSpec((Ne, Ke), lambda i: (0, 0)),
                pl.BlockSpec((1, Ne), lambda i: (0, 0)),
            ],
            out_specs=pl.BlockSpec((tm, Ne), lambda i: (i, 0)),
            compiler_params=pltpu.CompilerParams(
                dimension_semantics=("parallel",),
                vmem_limit_bytes=32 * 1024 * 1024,
            ),
        )(x_eff, w_eff, b_eff)

    if repack > 1:
        out_eff = out_eff.reshape(B, N)   # free row-major reshape back to [B, N]
    return out_eff


if __name__ == "__main__":
    # Shapes consistent with the module: state_dim=32, action_dim=8.
    state_dim, action_dim = 32, 8

    key = jax.random.PRNGKey(0)
    kw, kb, kx1, kx2, kx3 = jax.random.split(key, 5)

    # Deterministic params mimicking nn.Linear's uniform(-1/sqrt(in), 1/sqrt(in)).
    bound = 1.0 / jnp.sqrt(jnp.float32(state_dim))
    weight = jax.random.uniform(kw, (action_dim, state_dim), jnp.float32,
                                minval=-bound, maxval=bound)
    bias = jax.random.uniform(kb, (action_dim,), jnp.float32,
                              minval=-bound, maxval=bound)

    def ref(xv):
        return xv @ weight.T + bias

    # 1) Tiny batch (B=2): plain gridless path.
    x_small = jax.random.normal(kx1, (2, state_dim), jnp.float32)
    out = jax.block_until_ready(linear_qnetwork_forward(x_small, weight, bias))
    assert out.shape == (2, action_dim)
    assert jnp.allclose(out, ref(x_small), atol=1e-4, rtol=1e-4)

    # 2) Mid batch (B=4096): batch-into-lanes repack, still gridless/resident.
    x_mid = jax.random.normal(kx2, (4096, state_dim), jnp.float32)
    out = jax.block_until_ready(linear_qnetwork_forward(x_mid, weight, bias))
    assert out.shape == (4096, action_dim)
    assert jnp.allclose(out, ref(x_mid), atol=1e-4, rtol=1e-4)

    # 3) Force the batch-tiled grid path (incl. a partial last tile), B=500.
    x_odd = jax.random.normal(kx3, (500, state_dim), jnp.float32)
    out = jax.block_until_ready(
        linear_qnetwork_forward(x_odd, weight, bias, gridless_budget_bytes=0))
    assert out.shape == (500, action_dim)
    assert jnp.allclose(out, ref(x_odd), atol=1e-4, rtol=1e-4)

    # 4) Force tiled + repacked (>=2 grid steps, lane-dense out), B=4096.
    out = jax.block_until_ready(
        linear_qnetwork_forward(x_mid, weight, bias, gridless_budget_bytes=0))
    assert out.shape == (4096, action_dim)
    assert jnp.allclose(out, ref(x_mid), atol=1e-4, rtol=1e-4)

    print("KERNEL_OK")
</pallas_src>

<mosaic_0001>
module attributes {stable_mosaic.version = 11 : i64} {
  func.func @_linear_kernel(%arg0: memref<2x32xf32, #tpu.memory_space<vmem>>, %arg1: memref<8x32xf32, #tpu.memory_space<vmem>>, %arg2: memref<1x8xf32, #tpu.memory_space<vmem>>, %arg3: memref<2x8xf32, #tpu.memory_space<vmem>>) attributes {dimension_semantics = [], scalar_prefetch = 0 : i64, scratch_operands = 0 : i64, tpu.core_type = #tpu.core_type<tc>} {
    %c0 = arith.constant 0 : index
    %c0_0 = arith.constant 0 : index
    %0 = vector.load %arg0[%c0, %c0_0] : memref<2x32xf32, #tpu.memory_space<vmem>>, vector<2x32xf32>
    %c0_1 = arith.constant 0 : index
    %c0_2 = arith.constant 0 : index
    %1 = vector.load %arg1[%c0_1, %c0_2] : memref<8x32xf32, #tpu.memory_space<vmem>>, vector<8x32xf32>
    %cst = arith.constant dense<0.000000e+00> : vector<2x8xf32>
    %2 = tpu.matmul %0, %1, %cst {dimension_numbers = #tpu.dot_dimension_numbers<[1], [1], [0], [0], [0, 0, 1, 0], [], []>} : vector<2x32xf32>, vector<8x32xf32>, vector<2x8xf32> -> vector<2x8xf32>
    %c0_3 = arith.constant 0 : index
    %c0_4 = arith.constant 0 : index
    %3 = vector.load %arg2[%c0_3, %c0_4] : memref<1x8xf32, #tpu.memory_space<vmem>>, vector<1x8xf32>
    %4 = vector.broadcast %3 : vector<1x8xf32> to vector<2x8xf32>
    %5 = arith.addf %2, %4 : vector<2x8xf32>
    %c0_5 = arith.constant 0 : index
    %c0_6 = arith.constant 0 : index
    %6 = vector.load %arg3[%c0_5, %c0_6] : memref<2x8xf32, #tpu.memory_space<vmem>>, vector<2x8xf32>
    tpu.vector_store %arg3[%c0_5, %c0_6], %5 {strides = array<i32>} : memref<2x8xf32, #tpu.memory_space<vmem>>, vector<2x8xf32>,
    return
  }
}

</mosaic_0001>

<llo_original>
// kernel: tpu_custom_call.1
$region0: #{tpu_custom_call.1}
  #allocation0 [shape = 'u32[]', space=smem, size = 0x4, offset = 0x4, fixed_abs, tag = 'smem constant byte address 0x4 - core index']
  #allocation1 [shape = 'u32[144,128]{1,0:T(1,128)}', space=vmem, size = 0x12000, scoped, tag = 'internal scratch']
  %s0 = inlined_call_operand.hbm [shape: f32[2,32], index: 0, kind: input, shape index: {}]
  %s1 = inlined_call_operand.hbm [shape: f32[8,32], index: 1, kind: input, shape index: {}]
  %s2 = inlined_call_operand.vmem [shape: f32[1,8], index: 2, kind: input, shape index: {}]
  %s3 = inlined_call_operand.hbm [shape: f32[2,8], index: 3, kind: output, shape index: {}]
  %s4 = sld [smem:[#allocation0]]
  $region30: #{tpu_custom_call.1} parent=0
    _
  %s6 = ssub.s32 1, %s4
  %s7 = scalar_select 0, %s6, %s4
  $region1: #{tpu_custom_call.1} parent=0
    #allocation2 [shape = 'u8[1024]{0}', space=vmem, size = 0x400, scoped, tag = 'input window, operand 0, single buffered']
    #allocation3 [shape = 's32[1]{0}', space=sflag, size = 0x4, scoped, tag = 'scoped memory for tpu_custom_call.1']
    #allocation4 [shape = 's32[1]{0}', space=sflag, size = 0x4, scoped, tag = 'scoped memory for tpu_custom_call.1']
    #allocation5 [shape = 'u8[4096]{0}', space=vmem, size = 0x1000, scoped, tag = 'input window, operand 1, single buffered']
    #allocation6 [shape = 's32[1]{0}', space=sflag, size = 0x4, scoped, tag = 'scoped memory for tpu_custom_call.1']
    #allocation7 [shape = 'u8[1024]{0}', space=vmem, size = 0x400, scoped, tag = 'output window, operand 0, single buffered']
    %8 = vsyncpa [#allocation3], 0
    %9 = vsyncpa [#allocation6], 0
    %10 = vsyncpa [#allocation4], 0
    // Predicated region
    $region2: #{tpu_custom_call.1} parent=1 // pred_check
      _
    $region3: #{tpu_custom_call.1} parent=1 // pred_check_branch
      %12 = sbr.rel (0) target = $region5
    $region4: #{tpu_custom_call.1} parent=1 // pred_region
      %s14 = ssub.s32 32, 32
      %15 = vsyncadd [#allocation3], %s14
      %s17 = sshll.u32 [#allocation2], 4
      %s18 = int_to_ptr.vmem [resolvable:$true] %s17
      %20 = dma.hbm_to_vmem [thread:$0]  %s0, 32, %s18, [#allocation3]
    $region5: #{tpu_custom_call.1} parent=1 // pred_fallthru
      _
    // Predicated region
    $region6: #{tpu_custom_call.1} parent=1 // pred_check
      _
    $region7: #{tpu_custom_call.1} parent=1 // pred_check_branch
      %22 = sbr.rel (0) target = $region9
    $region8: #{tpu_custom_call.1} parent=1 // pred_region
      %s24 = ssub.s32 128, 128
      %25 = vsyncadd [#allocation6], %s24
      %s27 = sshll.u32 [#allocation5], 4
      %s28 = int_to_ptr.vmem [resolvable:$true] %s27
      %30 = dma.hbm_to_vmem [thread:$0]  %s1, 128, %s28, [#allocation6]
    $region9: #{tpu_custom_call.1} parent=1 // pred_fallthru
      _
    // Predicated region
    $region10: #{tpu_custom_call.1} parent=1 // pred_check
      _
    $region11: #{tpu_custom_call.1} parent=1 // pred_check_branch
      %32 = sbr.rel (0) target = $region13
    $region12: #{tpu_custom_call.1} parent=1 // pred_region
      _
    $region13: #{tpu_custom_call.1} parent=1 // pred_fallthru
      _
    // Predicated region
    $region14: #{tpu_custom_call.1} parent=1 // pred_check
      _
    $region15: #{tpu_custom_call.1} parent=1 // pred_check_branch
      %34 = sbr.rel (0) target = $region17
    $region16: #{tpu_custom_call.1} parent=1 // pred_region
      %35 = dma.done [#allocation3], 32
    $region17: #{tpu_custom_call.1} parent=1 // pred_fallthru
      _
    // Predicated region
    $region18: #{tpu_custom_call.1} parent=1 // pred_check
      _
    $region19: #{tpu_custom_call.1} parent=1 // pred_check_branch
      %37 = sbr.rel (0) target = $region21
    $region20: #{tpu_custom_call.1} parent=1 // pred_region
      %38 = dma.done [#allocation6], 128
    $region21: #{tpu_custom_call.1} parent=1 // pred_fallthru
      _
    %v39 = vld [vmem:[#allocation2] sm:$0x3]
    %v40 = vld [vmem:[#allocation5] sm:$0xff]
    %v41 = vld [vmem:[%s2] sm:$0x1]
    %v43 = vlaneseq
    %v44 = vshrl.u32 %v43, 7
    %v45 = vsub.s32 0, %v44
    %v46 = vrot.slane %v41, %v45
    %vm48 = vcmask 261120
    %v50 = vsel %vm48, %v39, 0
    %v53 = vsel %vm48, %v40, 0
    %55 = vmatprep.subr.mxu0 0.0
    %56 = vmatpush1.xpose.msra.mxu0 %v53
    %57 = vmatprep.subr.mxu0 0.0
    %58 = vmatpush1.xpose.msra.mxu0 0.0
    %59 = vmatprep.subr.mxu0 0.0
    %60 = vmatpush1.xpose.msra.mxu0 0.0
    %61 = vmatprep.subr.mxu0 0.0
    %62 = vmatpush1.xpose.msra.mxu0 0.0
    %63 = vmatprep.subr.mxu0 0.0
    %64 = vmatpush1.xpose.msra.mxu0 0.0
    %65 = vmatprep.subr.mxu0 0.0
    %66 = vmatpush1.xpose.msra.mxu0 0.0
    %67 = vmatprep.subr.mxu0 0.0
    %68 = vmatpush1.xpose.msra.mxu0 0.0
    %69 = vmatprep.subr.mxu0 0.0
    %70 = vmatpush1.xpose.msra.mxu0 0.0
    %71 = vmatprep.subr.mxu0 0.0
    %72 = vmatpush1.xpose.msra.mxu0 0.0
    %73 = vmatprep.subr.mxu0 0.0
    %74 = vmatpush1.xpose.msra.mxu0 0.0
    %75 = vmatprep.subr.mxu0 0.0
    %76 = vmatpush1.xpose.msra.mxu0 0.0
    %77 = vmatprep.subr.mxu0 0.0
    %78 = vmatpush1.xpose.msra.mxu0 0.0
    %79 = vmatprep.subr.mxu0 0.0
    %80 = vmatpush1.xpose.msra.mxu0 0.0
    %81 = vmatprep.subr.mxu0 0.0
    %82 = vmatpush1.xpose.msra.mxu0 0.0
    %83 = vmatprep.subr.mxu0 0.0
    %84 = vmatpush1.xpose.msra.mxu0 0.0
    %85 = vmatprep.subr.mxu0 0.0
    %86 = vmatpush1.xpose.msra.mxu0 0.0
    %87 = vmatprep.subr.mxu0 0.0
    %88 = vmatpush1.xpose.msra.mxu0 0.0
    %89 = vmatprep.subr.mxu0 0.0
    %90 = vmatpush1.xpose.msra.mxu0 0.0
    %91 = vmatprep.subr.mxu0 0.0
    %92 = vmatpush1.xpose.msra.mxu0 0.0
    %93 = vmatprep.subr.mxu0 0.0
    %94 = vmatpush1.xpose.msra.mxu0 0.0
    %95 = vmatprep.subr.mxu0 0.0
    %96 = vmatpush1.xpose.msra.mxu0 0.0
    %97 = vmatprep.subr.mxu0 0.0
    %98 = vmatpush1.xpose.msra.mxu0 0.0
    %99 = vmatprep.subr.mxu0 0.0
    %100 = vmatpush1.xpose.msra.mxu0 0.0
    %101 = vmatprep.subr.mxu0 0.0
    %102 = vmatpush1.xpose.msra.mxu0 0.0
    %103 = vmatprep.subr.mxu0 0.0
    %104 = vmatpush1.xpose.msra.mxu0 0.0
    %105 = vmatprep.subr.mxu0 0.0
    %106 = vmatpush1.xpose.msra.mxu0 0.0
    %107 = vmatprep.subr.mxu0 0.0
    %108 = vmatpush1.xpose.msra.mxu0 0.0
    %109 = vmatprep.subr.mxu0 0.0
    %110 = vmatpush1.xpose.msra.mxu0 0.0
    %111 = vmatprep.subr.mxu0 0.0
    %112 = vmatpush1.xpose.msra.mxu0 0.0
    %113 = vmatprep.subr.mxu0 0.0
    %114 = vmatpush1.xpose.msra.mxu0 0.0
    %115 = vmatprep.subr.mxu0 0.0
    %116 = vmatpush1.xpose.msra.mxu0 0.0
    %117 = vmatprep.subr.mxu0 0.0
    %118 = vmatpush1.xpose.msra.mxu0 0.0
    %119 = vmatprep.mubr.f32.mxu0 0.0
    %120 = vmatmul.mubr.f32.gmra.mrb[0].mxu0 %v50
    %v121 = vpop.f32.mrb[0].mxu0
    %v122 = vadd.f32 %v46, %v121
    %v123 = vpop.f32.mrb[0].mxu0
    %124 = vdwg.mxu0
    %vm125 = vcmask 58368
    %126 = vst.msk [vmem:[#allocation7] sm:$0x3] %vm125, %v122
    // Predicated region
    $region22: #{tpu_custom_call.1} parent=1 // pred_check
      _
    $region23: #{tpu_custom_call.1} parent=1 // pred_check_branch
      %128 = sbr.rel (0) target = $region25
    $region24: #{tpu_custom_call.1} parent=1 // pred_region
      %s130 = ssub.s32 32, 32
      %131 = vsyncadd [#allocation4], %s130
      %s133 = sshll.u32 [#allocation7], 4
      %s134 = int_to_ptr.vmem [resolvable:$true] %s133
      %136 = dma.vmem_to_hbm [thread:$0]  %s134, 32, %s3, [#allocation4]
    $region25: #{tpu_custom_call.1} parent=1 // pred_fallthru
      _
    // Predicated region
    $region26: #{tpu_custom_call.1} parent=1 // pred_check
      _
    $region27: #{tpu_custom_call.1} parent=1 // pred_check_branch
      %138 = sbr.rel (0) target = $region29
    $region28: #{tpu_custom_call.1} parent=1 // pred_region
      %139 = dma.done [#allocation4], 32
    $region29: #{tpu_custom_call.1} parent=1 // pred_fallthru
      _
    %140 = vsyncpa [#allocation3], 1
    %141 = vsyncpa [#allocation6], 1
    %142 = vsyncpa [#allocation4], 1

</llo_original>
